<compile_context>
chip_gen: v6e
topology: v6e:2x2x1
jax: 0.10.0
libtpu: 0.0.40
codegen_flags: <defaults>
</compile_context>

<pallas_src>
import functools

import jax
import jax.numpy as jnp
from jax.experimental import pallas as pl
from jax.experimental.pallas import tpu as pltpu


_LANE = 128      # lane tiling unit (last dim)
_SUBLANE = 8     # sublane tiling unit (second-last dim, f32)

# Double-buffered working-set budget used for tile selection. Kept <= ~32 MiB so
# the same tiling is safe on v7x (64 MiB VMEM per TensorCore) as well as
# v5e/v6e, while being ~25x larger than the previous ~1.3 MiB working set.
_VMEM_WORKSET_BUDGET = 32 * 1024 * 1024
_VMEM_LIMIT_BYTES = 48 * 1024 * 1024  # explicit scoped-VMEM limit for the compiler

# Below this many MACs, plain XLA beats any Pallas dispatch (the shipped 8x32x1
# config is pure padding + fixed overhead) -> use the fast path.
_PALLAS_MIN_MACS = 256 * 128 * 128

# Largest K (after 128-padding) for which we prefer a single full-K MXU pass
# (no reduction grid axis) before the working-set check.
_FULL_K_LIMIT = 4096


def _round_up(x, m):
    return (x + m - 1) // m * m


def _pick_tile(dim, unit, target):
    """Largest multiple of `unit` that exactly divides `dim` and is <= target."""
    best = unit
    t = unit
    limit = min(dim, max(target, unit))
    while t <= limit:
        if dim % t == 0:
            best = t
        t += unit
    return best


def _select_tiles(m_pad, n_pad, k_pad, itemsize):
    """Pick (tm, tn, tk) that exactly divide the padded dims and fit VMEM."""
    tm = _pick_tile(m_pad, _SUBLANE, 512)
    tn = _pick_tile(n_pad, _LANE, 512)
    tk = k_pad if k_pad <= _FULL_K_LIMIT else _pick_tile(k_pad, _LANE, 2048)

    def fits(tm_, tn_, tk_):
        # x, w and out tiles, each double-buffered by the BlockSpec pipeline.
        return 2 * (tm_ * tk_ + tk_ * tn_ + tm_ * tn_) * itemsize <= _VMEM_WORKSET_BUDGET

    # Shrink (keeping exact divisibility) until the working set fits:
    # huge K tiles first, then N, then M, then K down to the minimum.
    while not fits(tm, tn, tk):
        if tk > 2048:
            tk = _pick_tile(k_pad, _LANE, tk // 2)
        elif tn > _LANE:
            tn = _pick_tile(n_pad, _LANE, tn // 2)
        elif tm > _SUBLANE:
            tm = _pick_tile(m_pad, _SUBLANE, tm // 2)
        elif tk > _LANE:
            tk = _pick_tile(k_pad, _LANE, tk // 2)
        else:
            break
    return tm, tn, tk


# ---------------------------------------------------------------------------
# Kernels
# ---------------------------------------------------------------------------

def _linear_kernel_single_k(x_ref, w_ref, b_ref, o_ref):
    """One (tm, tn) output tile; the whole K contraction in a single MXU pass."""
    o_ref[...] = (
        jnp.dot(x_ref[...], w_ref[...], preferred_element_type=jnp.float32)
        + b_ref[...]
    ).astype(o_ref.dtype)


def _linear_kernel_ksum_f32(x_ref, w_ref, b_ref, o_ref):
    """K-tiled variant for f32 outputs: accumulate in place in the resident
    output block (bias is the k==0 init), no VMEM scratch."""
    k = pl.program_id(2)

    @pl.when(k == 0)
    def _():
        o_ref[...] = jnp.broadcast_to(b_ref[...], o_ref.shape)

    o_ref[...] += jnp.dot(x_ref[...], w_ref[...], preferred_element_type=jnp.float32)


def _linear_kernel_ksum_acc(x_ref, w_ref, b_ref, o_ref, acc_ref):
    """K-tiled variant for non-f32 outputs: f32 VMEM accumulator, bias added
    once in the finalize branch before the cast."""
    k = pl.program_id(2)

    @pl.when(k == 0)
    def _():
        acc_ref[...] = jnp.zeros_like(acc_ref)

    acc_ref[...] += jnp.dot(x_ref[...], w_ref[...], preferred_element_type=jnp.float32)

    @pl.when(k == pl.num_programs(2) - 1)
    def _():
        o_ref[...] = (acc_ref[...] + b_ref[...]).astype(o_ref.dtype)


# ---------------------------------------------------------------------------
# Wrapper
# ---------------------------------------------------------------------------

def _pallas_linear(x_p, w_p, b_p, tm, tn, tk):
    m_pad, k_pad = x_p.shape
    n_pad = w_p.shape[1]
    k_steps = k_pad // tk

    if k_steps == 1:
        # Full-K single pass: no reduction grid axis, no accumulator loop.
        grid = (m_pad // tm, n_pad // tn)
        in_specs = [
            pl.BlockSpec((tm, tk), lambda i, j: (i, 0)),   # x tile
            pl.BlockSpec((tk, tn), lambda i, j: (0, j)),   # w^T tile
            pl.BlockSpec((1, tn), lambda i, j: (0, j)),    # bias tile
        ]
        out_specs = pl.BlockSpec((tm, tn), lambda i, j: (i, j))
        semantics = ("parallel", "parallel")
        kernel = _linear_kernel_single_k
        scratch = []
    else:
        grid = (m_pad // tm, n_pad // tn, k_steps)
        in_specs = [
            pl.BlockSpec((tm, tk), lambda i, j, k: (i, k)),
            pl.BlockSpec((tk, tn), lambda i, j, k: (k, j)),
            pl.BlockSpec((1, tn), lambda i, j, k: (0, j)),
        ]
        out_specs = pl.BlockSpec((tm, tn), lambda i, j, k: (i, j))
        semantics = ("parallel", "parallel", "arbitrary")
        if x_p.dtype == jnp.float32:
            kernel = _linear_kernel_ksum_f32
            scratch = []
        else:
            kernel = _linear_kernel_ksum_acc
            scratch = [pltpu.VMEM((tm, tn), jnp.float32)]

    return pl.pallas_call(
        kernel,
        out_shape=jax.ShapeDtypeStruct((m_pad, n_pad), x_p.dtype),
        grid_spec=pltpu.PrefetchScalarGridSpec(
            num_scalar_prefetch=0,
            grid=grid,
            in_specs=in_specs,
            out_specs=out_specs,
            scratch_shapes=scratch,
        ),
        compiler_params=pltpu.CompilerParams(
            dimension_semantics=semantics,
            vmem_limit_bytes=_VMEM_LIMIT_BYTES,
        ),
    )(x_p, w_p, b_p)


def prepare_one_layer_linear(weight, bias=None):
    """One-time parameter layout (hoisted out of the per-call hot path):
    transpose weight (C, D) -> (D, C) and zero-pad D/C up to lane multiples."""
    C, D = weight.shape
    if bias is None:
        bias = jnp.zeros((C,), weight.dtype)
    k_pad = _round_up(D, _LANE)
    n_pad = _round_up(C, _LANE)
    w_p = jnp.pad(weight.T, ((0, k_pad - D), (0, n_pad - C)))
    b_p = jnp.pad(bias.reshape(1, C), ((0, 0), (0, n_pad - C)))
    return w_p, b_p


@functools.partial(jax.jit, static_argnames=("classes",))
def one_layer_linear_prepared(x, w_p, b_p, *, classes):
    """Hot-path forward on pre-laid-out params: x:(B, D) -> (B, classes)."""
    B, D = x.shape
    k_pad, _ = w_p.shape
    n_pad = w_p.shape[1]
    m_pad = _round_up(B, _SUBLANE)

    x_p = x
    if (m_pad, k_pad) != (B, D):
        x_p = jnp.pad(x, ((0, m_pad - B), (0, k_pad - D)))

    tm, tn, tk = _select_tiles(m_pad, n_pad, k_pad, jnp.dtype(x.dtype).itemsize)
    out_padded = _pallas_linear(x_p, w_p, b_p, tm, tn, tk)
    return out_padded[:B, :classes]


def one_layer_linear(x, weight, bias=None):
    """Forward of OneLayerLinear: y = x @ weight.T (+ bias).

    Tiny problems (like the shipped 8x32x1 config) use a plain-XLA fast path;
    everything else goes through the Pallas tiled MXU kernel.
    """
    B, D = x.shape
    C = weight.shape[0]
    if B * D * C < _PALLAS_MIN_MACS:
        y = x @ weight.T
        if bias is not None:
            y = y + bias[None, :]
        return y
    w_p, b_p = prepare_one_layer_linear(weight, bias)
    return one_layer_linear_prepared(x, w_p, b_p, classes=C)


if __name__ == "__main__":
    # Module config: OneLayerLinear(input_dim=32, classes=1, biasflag=True, stdev_input=0.005)
    batch, input_dim, classes, stdev_input = 8, 32, 1, 0.005

    key = jax.random.PRNGKey(0)
    kx, kw, kb = jax.random.split(key, 3)
    x = jax.random.normal(kx, (batch, input_dim), jnp.float32)
    # initialize_weights(): weight ~ Normal(0, stdev_input); bias: default-style uniform
    weight = stdev_input * jax.random.normal(kw, (classes, input_dim), jnp.float32)
    bound = 1.0 / jnp.sqrt(jnp.float32(input_dim))
    bias = jax.random.uniform(kb, (classes,), jnp.float32, minval=-bound, maxval=bound)

    out = jax.block_until_ready(one_layer_linear(x, weight, bias))
    ref = x @ weight.T + bias[None, :]
    assert out.shape == (batch, classes)
    assert jnp.allclose(out, ref, atol=1e-5, rtol=1e-5)

    # Non-toy shape: exercises divisor-aware padding + full-K single-pass kernel
    # (params prepared once, hot-path called on prepared params).
    B2, D2, C2 = 256, 640, 192
    kx2, kw2, kb2 = jax.random.split(jax.random.PRNGKey(1), 3)
    x2 = jax.random.normal(kx2, (B2, D2), jnp.float32)
    w2 = 0.02 * jax.random.normal(kw2, (C2, D2), jnp.float32)
    b2 = jax.random.uniform(kb2, (C2,), jnp.float32, minval=-0.1, maxval=0.1)
    w2_p, b2_p = prepare_one_layer_linear(w2, b2)
    out2 = jax.block_until_ready(one_layer_linear_prepared(x2, w2_p, b2_p, classes=C2))
    ref2 = x2 @ w2.T + b2[None, :]
    assert out2.shape == (B2, C2)
    assert jnp.allclose(out2, ref2, atol=1e-4, rtol=1e-4)

    # Large-K shape: forces the K-reduction grid axis (k_pad > full-K limit) and
    # covers the in-place f32 accumulation kernel.
    B3, D3, C3 = 64, 4608, 128
    kx3, kw3, kb3 = jax.random.split(jax.random.PRNGKey(2), 3)
    x3 = jax.random.normal(kx3, (B3, D3), jnp.float32)
    w3 = 0.01 * jax.random.normal(kw3, (C3, D3), jnp.float32)
    b3 = jax.random.uniform(kb3, (C3,), jnp.float32, minval=-0.1, maxval=0.1)
    w3_p, b3_p = prepare_one_layer_linear(w3, b3)
    out3 = jax.block_until_ready(one_layer_linear_prepared(x3, w3_p, b3_p, classes=C3))
    ref3 = x3 @ w3.T + b3[None, :]
    assert out3.shape == (B3, C3)
    assert jnp.allclose(out3, ref3, atol=1e-3, rtol=1e-3)

    print("KERNEL_OK")
</pallas_src>

<mosaic_0001>
module attributes {stable_mosaic.version = 11 : i64} {
  func.func @_linear_kernel_single_k(%arg0: i32, %arg1: i32, %arg2: memref<256x640xf32, #tpu.memory_space<vmem>>, %arg3: memref<640x256xf32, #tpu.memory_space<vmem>>, %arg4: memref<1x256xf32, #tpu.memory_space<vmem>>, %arg5: memref<256x256xf32, #tpu.memory_space<vmem>>) attributes {dimension_semantics = [#tpu.dimension_semantics<parallel>, #tpu.dimension_semantics<parallel>], iteration_bounds = array<i64: 1, 1>, scalar_prefetch = 0 : i64, scratch_operands = 0 : i64, tpu.core_type = #tpu.core_type<tc>, window_params = [{transform_indices = @transform_0, window_bounds = array<i64: 256, 640>}, {transform_indices = @transform_1, window_bounds = array<i64: 640, 256>}, {transform_indices = @transform_2, window_bounds = array<i64: 1, 256>}, {transform_indices = @transform_3, window_bounds = array<i64: 256, 256>}]} {
    %c0 = arith.constant 0 : index
    %c0_0 = arith.constant 0 : index
    %0 = vector.load %arg2[%c0, %c0_0] : memref<256x640xf32, #tpu.memory_space<vmem>>, vector<256x640xf32>
    %c0_1 = arith.constant 0 : index
    %c0_2 = arith.constant 0 : index
    %1 = vector.load %arg3[%c0_1, %c0_2] : memref<640x256xf32, #tpu.memory_space<vmem>>, vector<640x256xf32>
    %cst = arith.constant dense<0.000000e+00> : vector<256x256xf32>
    %2 = tpu.matmul %0, %1, %cst {dimension_numbers = #tpu.dot_dimension_numbers<[1], [0], [0], [1], [0, 0, 1, 1], [], []>} : vector<256x640xf32>, vector<640x256xf32>, vector<256x256xf32> -> vector<256x256xf32>
    %c0_3 = arith.constant 0 : index
    %c0_4 = arith.constant 0 : index
    %3 = vector.load %arg4[%c0_3, %c0_4] : memref<1x256xf32, #tpu.memory_space<vmem>>, vector<1x256xf32>
    %4 = vector.broadcast %3 : vector<1x256xf32> to vector<256x256xf32>
    %5 = arith.addf %2, %4 : vector<256x256xf32>
    %c0_5 = arith.constant 0 : index
    %c0_6 = arith.constant 0 : index
    %6 = vector.load %arg5[%c0_5, %c0_6] : memref<256x256xf32, #tpu.memory_space<vmem>>, vector<256x256xf32>
    tpu.vector_store %arg5[%c0_5, %c0_6], %5 {strides = array<i32>} : memref<256x256xf32, #tpu.memory_space<vmem>>, vector<256x256xf32>,
    return
  }
  func.func @transform_0(%arg0: i32, %arg1: i32) -> (i32, i32) {
    %c0_i32 = arith.constant 0 : i32
    %c0_i32_0 = arith.constant 0 : i32
    return %arg0, %c0_i32 : i32, i32
  }
  func.func @transform_1(%arg0: i32, %arg1: i32) -> (i32, i32) {
    %c0_i32 = arith.constant 0 : i32
    %c0_i32_0 = arith.constant 0 : i32
    return %c0_i32, %arg1 : i32, i32
  }
  func.func @transform_2(%arg0: i32, %arg1: i32) -> (i32, i32) {
    %c0_i32 = arith.constant 0 : i32
    %c0_i32_0 = arith.constant 0 : i32
    return %c0_i32, %arg1 : i32, i32
  }
  func.func @transform_3(%arg0: i32, %arg1: i32) -> (i32, i32) {
    %c0_i32 = arith.constant 0 : i32
    return %arg0, %arg1 : i32, i32
  }
}

</mosaic_0001>

<llo_original>
// kernel: one_layer_linear_prepared.1
$region0: #{one_layer_linear_prepared.1}
  #allocation0 [shape = 'u32[]', space=smem, size = 0x4, offset = 0x4, fixed_abs, tag = 'smem constant byte address 0x4 - core index']
  #allocation1 [shape = 'u32[144,128]{1,0:T(1,128)}', space=vmem, size = 0x12000, scoped, tag = 'internal scratch']
  %s0 = inlined_call_operand.hbm [shape: f32[256,640], index: 0, kind: input, shape index: {}]
  %s1 = inlined_call_operand.hbm [shape: f32[640,256], index: 1, kind: input, shape index: {}]
  %s2 = inlined_call_operand.vmem [shape: f32[1,256], index: 2, kind: input, shape index: {}]
  %s3 = inlined_call_operand.vmem [shape: f32[256,256], index: 3, kind: output, shape index: {}]
  %s4 = sld [smem:[#allocation0]]
  $region30: #{one_layer_linear_prepared.1} parent=0
    _
  %s6 = ssub.s32 1, %s4
  %s7 = scalar_select 0, %s6, %s4
  $region1: #{one_layer_linear_prepared.1} parent=0
    #allocation2 [shape = 'u8[655360]{0}', space=vmem, size = 0xa0000, scoped, tag = 'input window, operand 0, single buffered']
    #allocation3 [shape = 's32[1]{0}', space=sflag, size = 0x4, scoped, tag = 'scoped memory for one_layer_linear_prepared.1']
    #allocation4 [shape = 'u8[655360]{0}', space=vmem, size = 0xa0000, scoped, tag = 'input window, operand 1, single buffered']
    #allocation5 [shape = 's32[1]{0}', space=sflag, size = 0x4, scoped, tag = 'scoped memory for one_layer_linear_prepared.1']
    %8 = vsyncpa [#allocation3], 0
    %9 = vsyncpa [#allocation5], 0
    // Predicated region
    $region2: #{one_layer_linear_prepared.1} parent=1 // pred_check
      _
    $region3: #{one_layer_linear_prepared.1} parent=1 // pred_check_branch
      %11 = sbr.rel (0) target = $region5
    $region4: #{one_layer_linear_prepared.1} parent=1 // pred_region
      %s13 = ssub.s32 20480, 20480
      %14 = vsyncadd [#allocation3], %s13
      %s15 = sshll.u32 [#allocation2], 4
      %s16 = int_to_ptr.vmem [resolvable:$true] %s15
      %21 = dma.hbm_to_vmem [thread:$0]  %s0, 20480, %s16, [#allocation3], 640, 640, 40
    $region5: #{one_layer_linear_prepared.1} parent=1 // pred_fallthru
      _
    // Predicated region
    $region6: #{one_layer_linear_prepared.1} parent=1 // pred_check
      _
    $region7: #{one_layer_linear_prepared.1} parent=1 // pred_check_branch
      %23 = sbr.rel (0) target = $region9
    $region8: #{one_layer_linear_prepared.1} parent=1 // pred_region
      %s25 = ssub.s32 20480, 20480
      %26 = vsyncadd [#allocation5], %s25
      %s27 = sshll.u32 [#allocation4], 4
      %s28 = int_to_ptr.vmem [resolvable:$true] %s27
      %33 = dma.hbm_to_vmem [thread:$0]  %s1, 20480, %s28, [#allocation5], 256, 256, 16
    $region9: #{one_layer_linear_prepared.1} parent=1 // pred_fallthru
      _
    // Predicated region
    $region10: #{one_layer_linear_prepared.1} parent=1 // pred_check
      _
    $region11: #{one_layer_linear_prepared.1} parent=1 // pred_check_branch
      %35 = sbr.rel (0) target = $region13
    $region12: #{one_layer_linear_prepared.1} parent=1 // pred_region
      _
    $region13: #{one_layer_linear_prepared.1} parent=1 // pred_fallthru
      _
    // Predicated region
    $region14: #{one_layer_linear_prepared.1} parent=1 // pred_check
      _
    $region15: #{one_layer_linear_prepared.1} parent=1 // pred_check_branch
      %37 = sbr.rel (0) target = $region17
    $region16: #{one_layer_linear_prepared.1} parent=1 // pred_region
      %38 = dma.done [#allocation3], 20480
    $region17: #{one_layer_linear_prepared.1} parent=1 // pred_fallthru
      _
    // Predicated region
    $region18: #{one_layer_linear_prepared.1} parent=1 // pred_check
      _
    $region19: #{one_layer_linear_prepared.1} parent=1 // pred_check_branch
      %40 = sbr.rel (0) target = $region21
    $region20: #{one_layer_linear_prepared.1} parent=1 // pred_region
      %41 = dma.done [#allocation5], 20480
    $region21: #{one_layer_linear_prepared.1} parent=1 // pred_fallthru
      _
    %v42 = vld [vmem:[#allocation2] sm:$0xff]
    %v43 = vld [vmem:[#allocation2 + $0x8] sm:$0xff]
    %v44 = vld [vmem:[#allocation2 + $0x10] sm:$0xff]
    %v45 = vld [vmem:[#allocation2 + $0x18] sm:$0xff]
    %v46 = vld [vmem:[#allocation2 + $0x20] sm:$0xff]
    %v47 = vld [vmem:[#allocation2 + $0x28] sm:$0xff]
    %v48 = vld [vmem:[#allocation2 + $0x30] sm:$0xff]
    %v49 = vld [vmem:[#allocation2 + $0x38] sm:$0xff]
    %v50 = vld [vmem:[#allocation2 + $0x40] sm:$0xff]
    %v51 = vld [vmem:[#allocation2 + $0x48] sm:$0xff]
    %v52 = vld [vmem:[#allocation2 + $0x50] sm:$0xff]
    %v53 = vld [vmem:[#allocation2 + $0x58] sm:$0xff]
    %v54 = vld [vmem:[#allocation2 + $0x60] sm:$0xff]
    %v55 = vld [vmem:[#allocation2 + $0x68] sm:$0xff]
    %v56 = vld [vmem:[#allocation2 + $0x70] sm:$0xff]
    %v57 = vld [vmem:[#allocation2 + $0x78] sm:$0xff]
    %v58 = vld [vmem:[#allocation2 + $0x80] sm:$0xff]
    %v59 = vld [vmem:[#allocation2 + $0x88] sm:$0xff]
    %v60 = vld [vmem:[#allocation2 + $0x90] sm:$0xff]
    %v61 = vld [vmem:[#allocation2 + $0x98] sm:$0xff]
    %v62 = vld [vmem:[#allocation2 + $0xa0] sm:$0xff]
    %v63 = vld [vmem:[#allocation2 + $0xa8] sm:$0xff]
    %v64 = vld [vmem:[#allocation2 + $0xb0] sm:$0xff]
    %v65 = vld [vmem:[#allocation2 + $0xb8] sm:$0xff]
    %v66 = vld [vmem:[#allocation2 + $0xc0] sm:$0xff]
    %v67 = vld [vmem:[#allocation2 + $0xc8] sm:$0xff]
    %v68 = vld [vmem:[#allocation2 + $0xd0] sm:$0xff]
    %v69 = vld [vmem:[#allocation2 + $0xd8] sm:$0xff]
    %v70 = vld [vmem:[#allocation2 + $0xe0] sm:$0xff]
    %v71 = vld [vmem:[#allocation2 + $0xe8] sm:$0xff]
    %v72 = vld [vmem:[#allocation2 + $0xf0] sm:$0xff]
    %v73 = vld [vmem:[#allocation2 + $0xf8] sm:$0xff]
    %v74 = vld [vmem:[#allocation2 + $0x100] sm:$0xff]
    %v75 = vld [vmem:[#allocation2 + $0x108] sm:$0xff]
    %v76 = vld [vmem:[#allocation2 + $0x110] sm:$0xff]
    %v77 = vld [vmem:[#allocation2 + $0x118] sm:$0xff]
    %v78 = vld [vmem:[#allocation2 + $0x120] sm:$0xff]
    %v79 = vld [vmem:[#allocation2 + $0x128] sm:$0xff]
    %v80 = vld [vmem:[#allocation2 + $0x130] sm:$0xff]
    %v81 = vld [vmem:[#allocation2 + $0x138] sm:$0xff]
    %v82 = vld [vmem:[#allocation2 + $0x140] sm:$0xff]
    %v83 = vld [vmem:[#allocation2 + $0x148] sm:$0xff]
    %v84 = vld [vmem:[#allocation2 + $0x150] sm:$0xff]
    %v85 = vld [vmem:[#allocation2 + $0x158] sm:$0xff]
    %v86 = vld [vmem:[#allocation2 + $0x160] sm:$0xff]
    %v87 = vld [vmem:[#allocation2 + $0x168] sm:$0xff]
    %v88 = vld [vmem:[#allocation2 + $0x170] sm:$0xff]
    %v89 = vld [vmem:[#allocation2 + $0x178] sm:$0xff]
    %v90 = vld [vmem:[#allocation2 + $0x180] sm:$0xff]
    %v91 = vld [vmem:[#allocation2 + $0x188] sm:$0xff]
    %v92 = vld [vmem:[#allocation2 + $0x190] sm:$0xff]
    %v93 = vld [vmem:[#allocation2 + $0x198] sm:$0xff]
    %v94 = vld [vmem:[#allocation2 + $0x1a0] sm:$0xff]
    %v95 = vld [vmem:[#allocation2 + $0x1a8] sm:$0xff]
    %v96 = vld [vmem:[#allocation2 + $0x1b0] sm:$0xff]
    %v97 = vld [vmem:[#allocation2 + $0x1b8] sm:$0xff]
    %v98 = vld [vmem:[#allocation2 + $0x1c0] sm:$0xff]
    %v99 = vld [vmem:[#allocation2 + $0x1c8] sm:$0xff]
    %v100 = vld [vmem:[#allocation2 + $0x1d0] sm:$0xff]
    %v101 = vld [vmem:[#allocation2 + $0x1d8] sm:$0xff]
    %v102 = vld [vmem:[#allocation2 + $0x1e0] sm:$0xff]
    %v103 = vld [vmem:[#allocation2 + $0x1e8] sm:$0xff]
    %v104 = vld [vmem:[#allocation2 + $0x1f0] sm:$0xff]
    %v105 = vld [vmem:[#allocation2 + $0x1f8] sm:$0xff]
    %v106 = vld [vmem:[#allocation2 + $0x200] sm:$0xff]
    %v107 = vld [vmem:[#allocation2 + $0x208] sm:$0xff]
    %v108 = vld [vmem:[#allocation2 + $0x210] sm:$0xff]
    %v109 = vld [vmem:[#allocation2 + $0x218] sm:$0xff]
    %v110 = vld [vmem:[#allocation2 + $0x220] sm:$0xff]
    %v111 = vld [vmem:[#allocation2 + $0x228] sm:$0xff]
    %v112 = vld [vmem:[#allocation2 + $0x230] sm:$0xff]
    %v113 = vld [vmem:[#allocation2 + $0x238] sm:$0xff]
    %v114 = vld [vmem:[#allocation2 + $0x240] sm:$0xff]
    %v115 = vld [vmem:[#allocation2 + $0x248] sm:$0xff]
    %v116 = vld [vmem:[#allocation2 + $0x250] sm:$0xff]
    %v117 = vld [vmem:[#allocation2 + $0x258] sm:$0xff]
    %v118 = vld [vmem:[#allocation2 + $0x260] sm:$0xff]
    %v119 = vld [vmem:[#allocation2 + $0x268] sm:$0xff]
    %v120 = vld [vmem:[#allocation2 + $0x270] sm:$0xff]
    %v121 = vld [vmem:[#allocation2 + $0x278] sm:$0xff]
    %v122 = vld [vmem:[#allocation2 + $0x280] sm:$0xff]
    %v123 = vld [vmem:[#allocation2 + $0x288] sm:$0xff]
    %v124 = vld [vmem:[#allocation2 + $0x290] sm:$0xff]
    %v125 = vld [vmem:[#allocation2 + $0x298] sm:$0xff]
    %v126 = vld [vmem:[#allocation2 + $0x2a0] sm:$0xff]
    %v127 = vld [vmem:[#allocation2 + $0x2a8] sm:$0xff]
    %v128 = vld [vmem:[#allocation2 + $0x2b0] sm:$0xff]
    %v129 = vld [vmem:[#allocation2 + $0x2b8] sm:$0xff]
    %v130 = vld [vmem:[#allocation2 + $0x2c0] sm:$0xff]
    %v131 = vld [vmem:[#allocation2 + $0x2c8] sm:$0xff]
    %v132 = vld [vmem:[#allocation2 + $0x2d0] sm:$0xff]
    %v133 = vld [vmem:[#allocation2 + $0x2d8] sm:$0xff]
    %v134 = vld [vmem:[#allocation2 + $0x2e0] sm:$0xff]
    %v135 = vld [vmem:[#allocation2 + $0x2e8] sm:$0xff]
    %v136 = vld [vmem:[#allocation2 + $0x2f0] sm:$0xff]
    %v137 = vld [vmem:[#allocation2 + $0x2f8] sm:$0xff]
    %v138 = vld [vmem:[#allocation2 + $0x300] sm:$0xff]
    %v139 = vld [vmem:[#allocation2 + $0x308] sm:$0xff]
    %v140 = vld [vmem:[#allocation2 + $0x310] sm:$0xff]
    %v141 = vld [vmem:[#allocation2 + $0x318] sm:$0xff]
    %v142 = vld [vmem:[#allocation2 + $0x320] sm:$0xff]
    %v143 = vld [vmem:[#allocation2 + $0x328] sm:$0xff]
    %v144 = vld [vmem:[#allocation2 + $0x330] sm:$0xff]
    %v145 = vld [vmem:[#allocation2 + $0x338] sm:$0xff]
    %v146 = vld [vmem:[#allocation2 + $0x340] sm:$0xff]
    %v147 = vld [vmem:[#allocation2 + $0x348] sm:$0xff]
    %v148 = vld [vmem:[#allocation2 + $0x350] sm:$0xff]
    %v149 = vld [vmem:[#allocation2 + $0x358] sm:$0xff]
    %v150 = vld [vmem:[#allocation2 + $0x360] sm:$0xff]
    %v151 = vld [vmem:[#allocation2 + $0x368] sm:$0xff]
    %v152 = vld [vmem:[#allocation2 + $0x370] sm:$0xff]
    %v153 = vld [vmem:[#allocation2 + $0x378] sm:$0xff]
    %v154 = vld [vmem:[#allocation2 + $0x380] sm:$0xff]
    %v155 = vld [vmem:[#allocation2 + $0x388] sm:$0xff]
    %v156 = vld [vmem:[#allocation2 + $0x390] sm:$0xff]
    %v157 = vld [vmem:[#allocation2 + $0x398] sm:$0xff]
    %v158 = vld [vmem:[#allocation2 + $0x3a0] sm:$0xff]
    %v159 = vld [vmem:[#allocation2 + $0x3a8] sm:$0xff]
    %v160 = vld [vmem:[#allocation2 + $0x3b0] sm:$0xff]
    %v161 = vld [vmem:[#allocation2 + $0x3b8] sm:$0xff]
    %v162 = vld [vmem:[#allocation2 + $0x3c0] sm:$0xff]
    %v163 = vld [vmem:[#allocation2 + $0x3c8] sm:$0xff]
    %v164 = vld [vmem:[#allocation2 + $0x3d0] sm:$0xff]
    %v165 = vld [vmem:[#allocation2 + $0x3d8] sm:$0xff]
    %v166 = vld [vmem:[#allocation2 + $0x3e0] sm:$0xff]
    %v167 = vld [vmem:[#allocation2 + $0x3e8] sm:$0xff]
    %v168 = vld [vmem:[#allocation2 + $0x3f0] sm:$0xff]
    %v169 = vld [vmem:[#allocation2 + $0x3f8] sm:$0xff]
    %v170 = vld [vmem:[#allocation2 + $0x400] sm:$0xff]
    %v171 = vld [vmem:[#allocation2 + $0x408] sm:$0xff]
    %v172 = vld [vmem:[#allocation2 + $0x410] sm:$0xff]
    %v173 = vld [vmem:[#allocation2 + $0x418] sm:$0xff]
    %v174 = vld [vmem:[#allocation2 + $0x420] sm:$0xff]
    %v175 = vld [vmem:[#allocation2 + $0x428] sm:$0xff]
    %v176 = vld [vmem:[#allocation2 + $0x430] sm:$0xff]
    %v177 = vld [vmem:[#allocation2 + $0x438] sm:$0xff]
    %v178 = vld [vmem:[#allocation2 + $0x440] sm:$0xff]
    %v179 = vld [vmem:[#allocation2 + $0x448] sm:$0xff]
    %v180 = vld [vmem:[#allocation2 + $0x450] sm:$0xff]
    %v181 = vld [vmem:[#allocation2 + $0x458] sm:$0xff]
    %v182 = vld [vmem:[#allocation2 + $0x460] sm:$0xff]
    %v183 = vld [vmem:[#allocation2 + $0x468] sm:$0xff]
    %v184 = vld [vmem:[#allocation2 + $0x470] sm:$0xff]
    %v185 = vld [vmem:[#allocation2 + $0x478] sm:$0xff]
    %v186 = vld [vmem:[#allocation2 + $0x480] sm:$0xff]
    %v187 = vld [vmem:[#allocation2 + $0x488] sm:$0xff]
    %v188 = vld [vmem:[#allocation2 + $0x490] sm:$0xff]
    %v189 = vld [vmem:[#allocation2 + $0x498] sm:$0xff]
    %v190 = vld [vmem:[#allocation2 + $0x4a0] sm:$0xff]
    %v191 = vld [vmem:[#allocation2 + $0x4a8] sm:$0xff]
    %v192 = vld [vmem:[#allocation2 + $0x4b0] sm:$0xff]
    %v193 = vld [vmem:[#allocation2 + $0x4b8] sm:$0xff]
    %v194 = vld [vmem:[#allocation2 + $0x4c0] sm:$0xff]
    %v195 = vld [vmem:[#allocation2 + $0x4c8] sm:$0xff]
    %v196 = vld [vmem:[#allocation2 + $0x4d0] sm:$0xff]
    %v197 = vld [vmem:[#allocation2 + $0x4d8] sm:$0xff]
    %v198 = vld [vmem:[#allocation2 + $0x4e0] sm:$0xff]
    %v199 = vld [vmem:[#allocation2 + $0x4e8] sm:$0xff]
    %v200 = vld [vmem:[#allocation2 + $0x4f0] sm:$0xff]
    %v201 = vld [vmem:[#allocation2 + $0x4f8] sm:$0xff]
    %v202 = vld [vmem:[#allocation4] sm:$0xff]
    %v203 = vld [vmem:[#allocation4 + $0x8] sm:$0xff]
    %v204 = vld [vmem:[#allocation4 + $0x10] sm:$0xff]
    %v205 = vld [vmem:[#allocation4 + $0x18] sm:$0xff]
    %v206 = vld [vmem:[#allocation4 + $0x20] sm:$0xff]
    %v207 = vld [vmem:[#allocation4 + $0x28] sm:$0xff]
    %v208 = vld [vmem:[#allocation4 + $0x30] sm:$0xff]
    %v209 = vld [vmem:[#allocation4 + $0x38] sm:$0xff]
    %v210 = vld [vmem:[#allocation4 + $0x40] sm:$0xff]
    %v211 = vld [vmem:[#allocation4 + $0x48] sm:$0xff]
    %v212 = vld [vmem:[#allocation4 + $0x50] sm:$0xff]
    %v213 = vld [vmem:[#allocation4 + $0x58] sm:$0xff]
    %v214 = vld [vmem:[#allocation4 + $0x60] sm:$0xff]
    %v215 = vld [vmem:[#allocation4 + $0x68] sm:$0xff]
    %v216 = vld [vmem:[#allocation4 + $0x70] sm:$0xff]
    %v217 = vld [vmem:[#allocation4 + $0x78] sm:$0xff]
    %v218 = vld [vmem:[#allocation4 + $0x80] sm:$0xff]
    %v219 = vld [vmem:[#allocation4 + $0x88] sm:$0xff]
    %v220 = vld [vmem:[#allocation4 + $0x90] sm:$0xff]
    %v221 = vld [vmem:[#allocation4 + $0x98] sm:$0xff]
    %v222 = vld [vmem:[#allocation4 + $0xa0] sm:$0xff]
    %v223 = vld [vmem:[#allocation4 + $0xa8] sm:$0xff]
    %v224 = vld [vmem:[#allocation4 + $0xb0] sm:$0xff]
    %v225 = vld [vmem:[#allocation4 + $0xb8] sm:$0xff]
    %v226 = vld [vmem:[#allocation4 + $0xc0] sm:$0xff]
    %v227 = vld [vmem:[#allocation4 + $0xc8] sm:$0xff]
    %v228 = vld [vmem:[#allocation4 + $0xd0] sm:$0xff]
    %v229 = vld [vmem:[#allocation4 + $0xd8] sm:$0xff]
    %v230 = vld [vmem:[#allocation4 + $0xe0] sm:$0xff]
    %v231 = vld [vmem:[#allocation4 + $0xe8] sm:$0xff]
    %v232 = vld [vmem:[#allocation4 + $0xf0] sm:$0xff]
    %v233 = vld [vmem:[#allocation4 + $0xf8] sm:$0xff]
    %v234 = vld [vmem:[#allocation4 + $0x100] sm:$0xff]
    %v235 = vld [vmem:[#allocation4 + $0x108] sm:$0xff]
    %v236 = vld [vmem:[#allocation4 + $0x110] sm:$0xff]
    %v237 = vld [vmem:[#allocation4 + $0x118] sm:$0xff]
    %v238 = vld [vmem:[#allocation4 + $0x120] sm:$0xff]
    %v239 = vld [vmem:[#allocation4 + $0x128] sm:$0xff]
    %v240 = vld [vmem:[#allocation4 + $0x130] sm:$0xff]
    %v241 = vld [vmem:[#allocation4 + $0x138] sm:$0xff]
    %v242 = vld [vmem:[#allocation4 + $0x140] sm:$0xff]
    %v243 = vld [vmem:[#allocation4 + $0x148] sm:$0xff]
    %v244 = vld [vmem:[#allocation4 + $0x150] sm:$0xff]
    %v245 = vld [vmem:[#allocation4 + $0x158] sm:$0xff]
    %v246 = vld [vmem:[#allocation4 + $0x160] sm:$0xff]
    %v247 = vld [vmem:[#allocation4 + $0x168] sm:$0xff]
    %v248 = vld [vmem:[#allocation4 + $0x170] sm:$0xff]
    %v249 = vld [vmem:[#allocation4 + $0x178] sm:$0xff]
    %v250 = vld [vmem:[#allocation4 + $0x180] sm:$0xff]
    %v251 = vld [vmem:[#allocation4 + $0x188] sm:$0xff]
    %v252 = vld [vmem:[#allocation4 + $0x190] sm:$0xff]
    %v253 = vld [vmem:[#allocation4 + $0x198] sm:$0xff]
    %v254 = vld [vmem:[#allocation4 + $0x1a0] sm:$0xff]
    %v255 = vld [vmem:[#allocation4 + $0x1a8] sm:$0xff]
    %v256 = vld [vmem:[#allocation4 + $0x1b0] sm:$0xff]
    %v257 = vld [vmem:[#allocation4 + $0x1b8] sm:$0xff]
    %v258 = vld [vmem:[#allocation4 + $0x1c0] sm:$0xff]
    %v259 = vld [vmem:[#allocation4 + $0x1c8] sm:$0xff]
    %v260 = vld [vmem:[#allocation4 + $0x1d0] sm:$0xff]
    %v261 = vld [vmem:[#allocation4 + $0x1d8] sm:$0xff]
    %v262 = vld [vmem:[#allocation4 + $0x1e0] sm:$0xff]
    %v263 = vld [vmem:[#allocation4 + $0x1e8] sm:$0xff]
    %v264 = vld [vmem:[#allocation4 + $0x1f0] sm:$0xff]
    %v265 = vld [vmem:[#allocation4 + $0x1f8] sm:$0xff]
    %v266 = vld [vmem:[#allocation4 + $0x200] sm:$0xff]
    %v267 = vld [vmem:[#allocation4 + $0x208] sm:$0xff]
    %v268 = vld [vmem:[#allocation4 + $0x210] sm:$0xff]
    %v269 = vld [vmem:[#allocation4 + $0x218] sm:$0xff]
    %v270 = vld [vmem:[#allocation4 + $0x220] sm:$0xff]
    %v271 = vld [vmem:[#allocation4 + $0x228] sm:$0xff]
    %v272 = vld [vmem:[#allocation4 + $0x230] sm:$0xff]
    %v273 = vld [vmem:[#allocation4 + $0x238] sm:$0xff]
    %v274 = vld [vmem:[#allocation4 + $0x240] sm:$0xff]
    %v275 = vld [vmem:[#allocation4 + $0x248] sm:$0xff]
    %v276 = vld [vmem:[#allocation4 + $0x250] sm:$0xff]
    %v277 = vld [vmem:[#allocation4 + $0x258] sm:$0xff]
    %v278 = vld [vmem:[#allocation4 + $0x260] sm:$0xff]
    %v279 = vld [vmem:[#allocation4 + $0x268] sm:$0xff]
    %v280 = vld [vmem:[#allocation4 + $0x270] sm:$0xff]
    %v281 = vld [vmem:[#allocation4 + $0x278] sm:$0xff]
    %v282 = vld [vmem:[#allocation4 + $0x280] sm:$0xff]
    %v283 = vld [vmem:[#allocation4 + $0x288] sm:$0xff]
    %v284 = vld [vmem:[#allocation4 + $0x290] sm:$0xff]
    %v285 = vld [vmem:[#allocation4 + $0x298] sm:$0xff]
    %v286 = vld [vmem:[#allocation4 + $0x2a0] sm:$0xff]
    %v287 = vld [vmem:[#allocation4 + $0x2a8] sm:$0xff]
    %v288 = vld [vmem:[#allocation4 + $0x2b0] sm:$0xff]
    %v289 = vld [vmem:[#allocation4 + $0x2b8] sm:$0xff]
    %v290 = vld [vmem:[#allocation4 + $0x2c0] sm:$0xff]
    %v291 = vld [vmem:[#allocation4 + $0x2c8] sm:$0xff]
    %v292 = vld [vmem:[#allocation4 + $0x2d0] sm:$0xff]
    %v293 = vld [vmem:[#allocation4 + $0x2d8] sm:$0xff]
    %v294 = vld [vmem:[#allocation4 + $0x2e0] sm:$0xff]
    %v295 = vld [vmem:[#allocation4 + $0x2e8] sm:$0xff]
    %v296 = vld [vmem:[#allocation4 + $0x2f0] sm:$0xff]
    %v297 = vld [vmem:[#allocation4 + $0x2f8] sm:$0xff]
    %v298 = vld [vmem:[#allocation4 + $0x300] sm:$0xff]
    %v299 = vld [vmem:[#allocation4 + $0x308] sm:$0xff]
    %v300 = vld [vmem:[#allocation4 + $0x310] sm:$0xff]
    %v301 = vld [vmem:[#allocation4 + $0x318] sm:$0xff]
    %v302 = vld [vmem:[#allocation4 + $0x320] sm:$0xff]
    %v303 = vld [vmem:[#allocation4 + $0x328] sm:$0xff]
    %v304 = vld [vmem:[#allocation4 + $0x330] sm:$0xff]
    %v305 = vld [vmem:[#allocation4 + $0x338] sm:$0xff]
    %v306 = vld [vmem:[#allocation4 + $0x340] sm:$0xff]
    %v307 = vld [vmem:[#allocation4 + $0x348] sm:$0xff]
    %v308 = vld [vmem:[#allocation4 + $0x350] sm:$0xff]
    %v309 = vld [vmem:[#allocation4 + $0x358] sm:$0xff]
    %v310 = vld [vmem:[#allocation4 + $0x360] sm:$0xff]
    %v311 = vld [vmem:[#allocation4 + $0x368] sm:$0xff]
    %v312 = vld [vmem:[#allocation4 + $0x370] sm:$0xff]
    %v313 = vld [vmem:[#allocation4 + $0x378] sm:$0xff]
    %v314 = vld [vmem:[#allocation4 + $0x380] sm:$0xff]
    %v315 = vld [vmem:[#allocation4 + $0x388] sm:$0xff]
    %v316 = vld [vmem:[#allocation4 + $0x390] sm:$0xff]
    %v317 = vld [vmem:[#allocation4 + $0x398] sm:$0xff]
    %v318 = vld [vmem:[#allocation4 + $0x3a0] sm:$0xff]
    %v319 = vld [vmem:[#allocation4 + $0x3a8] sm:$0xff]
    %v320 = vld [vmem:[#allocation4 + $0x3b0] sm:$0xff]
    %v321 = vld [vmem:[#allocation4 + $0x3b8] sm:$0xff]
    %v322 = vld [vmem:[#allocation4 + $0x3c0] sm:$0xff]
    %v323 = vld [vmem:[#allocation4 + $0x3c8] sm:$0xff]
    %v324 = vld [vmem:[#allocation4 + $0x3d0] sm:$0xff]
    %v325 = vld [vmem:[#allocation4 + $0x3d8] sm:$0xff]
    %v326 = vld [vmem:[#allocation4 + $0x3e0] sm:$0xff]
    %v327 = vld [vmem:[#allocation4 + $0x3e8] sm:$0xff]
    %v328 = vld [vmem:[#allocation4 + $0x3f0] sm:$0xff]
    %v329 = vld [vmem:[#allocation4 + $0x3f8] sm:$0xff]
    %v330 = vld [vmem:[#allocation4 + $0x400] sm:$0xff]
    %v331 = vld [vmem:[#allocation4 + $0x408] sm:$0xff]
    %v332 = vld [vmem:[#allocation4 + $0x410] sm:$0xff]
    %v333 = vld [vmem:[#allocation4 + $0x418] sm:$0xff]
    %v334 = vld [vmem:[#allocation4 + $0x420] sm:$0xff]
    %v335 = vld [vmem:[#allocation4 + $0x428] sm:$0xff]
    %v336 = vld [vmem:[#allocation4 + $0x430] sm:$0xff]
    %v337 = vld [vmem:[#allocation4 + $0x438] sm:$0xff]
    %v338 = vld [vmem:[#allocation4 + $0x440] sm:$0xff]
    %v339 = vld [vmem:[#allocation4 + $0x448] sm:$0xff]
    %v340 = vld [vmem:[#allocation4 + $0x450] sm:$0xff]
    %v341 = vld [vmem:[#allocation4 + $0x458] sm:$0xff]
    %v342 = vld [vmem:[#allocation4 + $0x460] sm:$0xff]
    %v343 = vld [vmem:[#allocation4 + $0x468] sm:$0xff]
    %v344 = vld [vmem:[#allocation4 + $0x470] sm:$0xff]
    %v345 = vld [vmem:[#allocation4 + $0x478] sm:$0xff]
    %v346 = vld [vmem:[#allocation4 + $0x480] sm:$0xff]
    %v347 = vld [vmem:[#allocation4 + $0x488] sm:$0xff]
    %v348 = vld [vmem:[#allocation4 + $0x490] sm:$0xff]
    %v349 = vld [vmem:[#allocation4 + $0x498] sm:$0xff]
    %v350 = vld [vmem:[#allocation4 + $0x4a0] sm:$0xff]
    %v351 = vld [vmem:[#allocation4 + $0x4a8] sm:$0xff]
    %v352 = vld [vmem:[#allocation4 + $0x4b0] sm:$0xff]
    %v353 = vld [vmem:[#allocation4 + $0x4b8] sm:$0xff]
    %v354 = vld [vmem:[#allocation4 + $0x4c0] sm:$0xff]
    %v355 = vld [vmem:[#allocation4 + $0x4c8] sm:$0xff]
    %v356 = vld [vmem:[#allocation4 + $0x4d0] sm:$0xff]
    %v357 = vld [vmem:[#allocation4 + $0x4d8] sm:$0xff]
    %v358 = vld [vmem:[#allocation4 + $0x4e0] sm:$0xff]
    %v359 = vld [vmem:[#allocation4 + $0x4e8] sm:$0xff]
    %v360 = vld [vmem:[#allocation4 + $0x4f0] sm:$0xff]
    %v361 = vld [vmem:[#allocation4 + $0x4f8] sm:$0xff]
    %v362 = vld [vmem:[%s2] sm:$0x3]
    %v364 = vlaneseq
    %v365 = vshrl.u32 %v364, 7
    %v366 = vsub.s32 0, %v365
    %v367 = vrot.slane %v362, %v366
    %v368 = vlaneseq
    %v369 = vshrl.u32 %v368, 7
    %v370 = vsub.s32 1, %v369
    %v371 = vrot.slane %v362, %v370
    %374 = vmatprep.subr.mxu0 %v233
    %375 = vmatpush1.msra.mxu0 %v232
    %376 = vmatprep.subr.mxu0 %v231
    %377 = vmatpush1.msra.mxu0 %v230
    %378 = vmatprep.subr.mxu0 %v229
    %379 = vmatpush1.msra.mxu0 %v228
    %380 = vmatprep.subr.mxu0 %v227
    %381 = vmatpush1.msra.mxu0 %v226
    %382 = vmatprep.subr.mxu0 %v225
    %383 = vmatpush1.msra.mxu0 %v224
    %384 = vmatprep.subr.mxu0 %v223
    %385 = vmatpush1.msra.mxu0 %v222
    %386 = vmatprep.subr.mxu0 %v221
    %387 = vmatpush1.msra.mxu0 %v220
    %388 = vmatprep.subr.mxu0 %v219
    %389 = vmatpush1.msra.mxu0 %v218
    %390 = vmatprep.subr.mxu0 %v217
    %391 = vmatpush1.msra.mxu0 %v216
    %392 = vmatprep.subr.mxu0 %v215
    %393 = vmatpush1.msra.mxu0 %v214
    %394 = vmatprep.subr.mxu0 %v213
    %395 = vmatpush1.msra.mxu0 %v212
    %396 = vmatprep.subr.mxu0 %v211
    %397 = vmatpush1.msra.mxu0 %v210
    %398 = vmatprep.subr.mxu0 %v209
    %399 = vmatpush1.msra.mxu0 %v208
    %400 = vmatprep.subr.mxu0 %v207
    %401 = vmatpush1.msra.mxu0 %v206
    %402 = vmatprep.subr.mxu0 %v205
    %403 = vmatpush1.msra.mxu0 %v204
    %404 = vmatprep.subr.mxu0 %v203
    %405 = vmatpush1.msra.mxu0 %v202
    %406 = vmatprep.subr.mxu0 %v265
    %407 = vmatpush2.msra.mxu0 %v264
    %408 = vmatprep.subr.mxu0 %v263
    %409 = vmatpush2.msra.mxu0 %v262
    %410 = vmatprep.subr.mxu0 %v261
    %411 = vmatpush2.msra.mxu0 %v260
    %412 = vmatprep.subr.mxu0 %v259
    %413 = vmatpush2.msra.mxu0 %v258
    %414 = vmatprep.subr.mxu0 %v257
    %415 = vmatpush2.msra.mxu0 %v256
    %416 = vmatprep.subr.mxu0 %v255
    %417 = vmatpush2.msra.mxu0 %v254
    %418 = vmatprep.subr.mxu0 %v253
    %419 = vmatpush2.msra.mxu0 %v252
    %420 = vmatprep.subr.mxu0 %v251
    %421 = vmatpush2.msra.mxu0 %v250
    %422 = vmatprep.subr.mxu0 %v249
    %423 = vmatpush2.msra.mxu0 %v248
    %424 = vmatprep.subr.mxu0 %v247
    %425 = vmatpush2.msra.mxu0 %v246
    %426 = vmatprep.subr.mxu0 %v245
    %427 = vmatpush2.msra.mxu0 %v244
    %428 = vmatprep.subr.mxu0 %v243
    %429 = vmatpush2.msra.mxu0 %v242
    %430 = vmatprep.subr.mxu0 %v241
    %431 = vmatpush2.msra.mxu0 %v240
    %432 = vmatprep.subr.mxu0 %v239
    %433 = vmatpush2.msra.mxu0 %v238
    %434 = vmatprep.subr.mxu0 %v237
    %435 = vmatpush2.msra.mxu0 %v236
    %436 = vmatprep.subr.mxu0 %v235
    %437 = vmatpush2.msra.mxu0 %v234
    %438 = vmatprep.mubr.f32.mxu0 %v43
    %439 = vmatmul.mubr.f32.gmra.mxu0 %v42
    %v440 = vpop.f32.mrf.mxu0
    %v441 = vadd.f32 %v367, %v440
    %v442 = vpop.f32.mrf.mxu0
    %v443 = vadd.f32 %v371, %v442
    %444 = vmatprep.mubr.f32.mxu0 %v48
    %445 = vmatmul.mubr.f32.gmra.mxu0 %v47
    %v446 = vpop.f32.mrf.mxu0
    %v447 = vadd.f32 %v367, %v446
    %v448 = vpop.f32.mrf.mxu0
    %v449 = vadd.f32 %v371, %v448
    %450 = vmatprep.mubr.f32.mxu0 %v53
    %451 = vmatmul.mubr.f32.gmra.mxu0 %v52
    %v452 = vpop.f32.mrf.mxu0
    %v453 = vadd.f32 %v367, %v452
    %v454 = vpop.f32.mrf.mxu0
    %v455 = vadd.f32 %v371, %v454
    %456 = vmatprep.mubr.f32.mxu0 %v58
    %457 = vmatmul.mubr.f32.gmra.mxu0 %v57
    %v458 = vpop.f32.mrf.mxu0
    %v459 = vadd.f32 %v367, %v458
    %v460 = vpop.f32.mrf.mxu0
    %v461 = vadd.f32 %v371, %v460
    %462 = vmatprep.mubr.f32.mxu0 %v63
    %463 = vmatmul.mubr.f32.gmra.mxu0 %v62
    %v464 = vpop.f32.mrf.mxu0
    %v465 = vadd.f32 %v367, %v464
    %v466 = vpop.f32.mrf.mxu0
    %v467 = vadd.f32 %v371, %v466
    %468 = vmatprep.mubr.f32.mxu0 %v68
    %469 = vmatmul.mubr.f32.gmra.mxu0 %v67
    %v470 = vpop.f32.mrf.mxu0
    %v471 = vadd.f32 %v367, %v470
    %v472 = vpop.f32.mrf.mxu0
    %v473 = vadd.f32 %v371, %v472
    %474 = vmatprep.mubr.f32.mxu0 %v73
    %475 = vmatmul.mubr.f32.gmra.mxu0 %v72
    %v476 = vpop.f32.mrf.mxu0
    %v477 = vadd.f32 %v367, %v476
    %v478 = vpop.f32.mrf.mxu0
    %v479 = vadd.f32 %v371, %v478
    %480 = vmatprep.mubr.f32.mxu0 %v78
    %481 = vmatmul.mubr.f32.gmra.mxu0 %v77
    %v482 = vpop.f32.mrf.mxu0
    %v483 = vadd.f32 %v367, %v482
    %v484 = vpop.f32.mrf.mxu0
    %v485 = vadd.f32 %v371, %v484
    %486 = vmatprep.mubr.f32.mxu0 %v83
    %487 = vmatmul.mubr.f32.gmra.mxu0 %v82
    %v488 = vpop.f32.mrf.mxu0
    %v489 = vadd.f32 %v367, %v488
    %v490 = vpop.f32.mrf.mxu0
    %v491 = vadd.f32 %v371, %v490
    %492 = vmatprep.mubr.f32.mxu0 %v88
    %493 = vmatmul.mubr.f32.gmra.mxu0 %v87
    %v494 = vpop.f32.mrf.mxu0
    %v495 = vadd.f32 %v367, %v494
    %v496 = vpop.f32.mrf.mxu0
    %v497 = vadd.f32 %v371, %v496
    %498 = vmatprep.mubr.f32.mxu0 %v93
    %499 = vmatmul.mubr.f32.gmra.mxu0 %v92
    %v500 = vpop.f32.mrf.mxu0
    %v501 = vadd.f32 %v367, %v500
    %v502 = vpop.f32.mrf.mxu0
    %v503 = vadd.f32 %v371, %v502
    %504 = vmatprep.mubr.f32.mxu0 %v98
    %505 = vmatmul.mubr.f32.gmra.mxu0 %v97
    %v506 = vpop.f32.mrf.mxu0
    %v507 = vadd.f32 %v367, %v506
    %v508 = vpop.f32.mrf.mxu0
    %v509 = vadd.f32 %v371, %v508
    %510 = vmatprep.mubr.f32.mxu0 %v103
    %511 = vmatmul.mubr.f32.gmra.mxu0 %v102
    %v512 = vpop.f32.mrf.mxu0
    %v513 = vadd.f32 %v367, %v512
    %v514 = vpop.f32.mrf.mxu0
    %v515 = vadd.f32 %v371, %v514
    %516 = vmatprep.mubr.f32.mxu0 %v108
    %517 = vmatmul.mubr.f32.gmra.mxu0 %v107
    %v518 = vpop.f32.mrf.mxu0
    %v519 = vadd.f32 %v367, %v518
    %v520 = vpop.f32.mrf.mxu0
    %v521 = vadd.f32 %v371, %v520
    %522 = vmatprep.mubr.f32.mxu0 %v113
    %523 = vmatmul.mubr.f32.gmra.mxu0 %v112
    %v524 = vpop.f32.mrf.mxu0
    %v525 = vadd.f32 %v367, %v524
    %v526 = vpop.f32.mrf.mxu0
    %v527 = vadd.f32 %v371, %v526
    %528 = vmatprep.mubr.f32.mxu0 %v118
    %529 = vmatmul.mubr.f32.gmra.mxu0 %v117
    %v530 = vpop.f32.mrf.mxu0
    %v531 = vadd.f32 %v367, %v530
    %v532 = vpop.f32.mrf.mxu0
    %v533 = vadd.f32 %v371, %v532
    %534 = vmatprep.mubr.f32.mxu0 %v123
    %535 = vmatmul.mubr.f32.gmra.mxu0 %v122
    %v536 = vpop.f32.mrf.mxu0
    %v537 = vadd.f32 %v367, %v536
    %v538 = vpop.f32.mrf.mxu0
    %v539 = vadd.f32 %v371, %v538
    %540 = vmatprep.mubr.f32.mxu0 %v128
    %541 = vmatmul.mubr.f32.gmra.mxu0 %v127
    %v542 = vpop.f32.mrf.mxu0
    %v543 = vadd.f32 %v367, %v542
    %v544 = vpop.f32.mrf.mxu0
    %v545 = vadd.f32 %v371, %v544
    %546 = vmatprep.mubr.f32.mxu0 %v133
    %547 = vmatmul.mubr.f32.gmra.mxu0 %v132
    %v548 = vpop.f32.mrf.mxu0
    %v549 = vadd.f32 %v367, %v548
    %v550 = vpop.f32.mrf.mxu0
    %v551 = vadd.f32 %v371, %v550
    %552 = vmatprep.mubr.f32.mxu0 %v138
    %553 = vmatmul.mubr.f32.gmra.mxu0 %v137
    %v554 = vpop.f32.mrf.mxu0
    %v555 = vadd.f32 %v367, %v554
    %v556 = vpop.f32.mrf.mxu0
    %v557 = vadd.f32 %v371, %v556
    %558 = vmatprep.mubr.f32.mxu0 %v143
    %559 = vmatmul.mubr.f32.gmra.mxu0 %v142
    %v560 = vpop.f32.mrf.mxu0
    %v561 = vadd.f32 %v367, %v560
    %v562 = vpop.f32.mrf.mxu0
    %v563 = vadd.f32 %v371, %v562
    %564 = vmatprep.mubr.f32.mxu0 %v148
    %565 = vmatmul.mubr.f32.gmra.mxu0 %v147
    %v566 = vpop.f32.mrf.mxu0
    %v567 = vadd.f32 %v367, %v566
    %v568 = vpop.f32.mrf.mxu0
    %v569 = vadd.f32 %v371, %v568
    %570 = vmatprep.mubr.f32.mxu0 %v153
    %571 = vmatmul.mubr.f32.gmra.mxu0 %v152
    %v572 = vpop.f32.mrf.mxu0
    %v573 = vadd.f32 %v367, %v572
    %v574 = vpop.f32.mrf.mxu0
    %v575 = vadd.f32 %v371, %v574
    %576 = vmatprep.mubr.f32.mxu0 %v158
    %577 = vmatmul.mubr.f32.gmra.mxu0 %v157
    %v578 = vpop.f32.mrf.mxu0
    %v579 = vadd.f32 %v367, %v578
    %v580 = vpop.f32.mrf.mxu0
    %v581 = vadd.f32 %v371, %v580
    %582 = vmatprep.mubr.f32.mxu0 %v163
    %583 = vmatmul.mubr.f32.gmra.mxu0 %v162
    %v584 = vpop.f32.mrf.mxu0
    %v585 = vadd.f32 %v367, %v584
    %v586 = vpop.f32.mrf.mxu0
    %v587 = vadd.f32 %v371, %v586
    %588 = vmatprep.mubr.f32.mxu0 %v168
    %589 = vmatmul.mubr.f32.gmra.mxu0 %v167
    %v590 = vpop.f32.mrf.mxu0
    %v591 = vadd.f32 %v367, %v590
    %v592 = vpop.f32.mrf.mxu0
    %v593 = vadd.f32 %v371, %v592
    %594 = vmatprep.mubr.f32.mxu0 %v173
    %595 = vmatmul.mubr.f32.gmra.mxu0 %v172
    %v596 = vpop.f32.mrf.mxu0
    %v597 = vadd.f32 %v367, %v596
    %v598 = vpop.f32.mrf.mxu0
    %v599 = vadd.f32 %v371, %v598
    %600 = vmatprep.mubr.f32.mxu0 %v178
    %601 = vmatmul.mubr.f32.gmra.mxu0 %v177
    %v602 = vpop.f32.mrf.mxu0
    %v603 = vadd.f32 %v367, %v602
    %v604 = vpop.f32.mrf.mxu0
    %v605 = vadd.f32 %v371, %v604
    %606 = vmatprep.mubr.f32.mxu0 %v183
    %607 = vmatmul.mubr.f32.gmra.mxu0 %v182
    %v608 = vpop.f32.mrf.mxu0
    %v609 = vadd.f32 %v367, %v608
    %v610 = vpop.f32.mrf.mxu0
    %v611 = vadd.f32 %v371, %v610
    %612 = vmatprep.mubr.f32.mxu0 %v188
    %613 = vmatmul.mubr.f32.gmra.mxu0 %v187
    %v614 = vpop.f32.mrf.mxu0
    %v615 = vadd.f32 %v367, %v614
    %v616 = vpop.f32.mrf.mxu0
    %v617 = vadd.f32 %v371, %v616
    %618 = vmatprep.mubr.f32.mxu0 %v193
    %619 = vmatmul.mubr.f32.gmra.mxu0 %v192
    %v620 = vpop.f32.mrf.mxu0
    %v621 = vadd.f32 %v367, %v620
    %v622 = vpop.f32.mrf.mxu0
    %v623 = vadd.f32 %v371, %v622
    %624 = vmatprep.mubr.f32.mxu0 %v198
    %625 = vmatmul.mubr.f32.gmra.mxu0 %v197
    %v626 = vpop.f32.mrf.mxu0
    %v627 = vadd.f32 %v367, %v626
    %v628 = vpop.f32.mrf.mxu0
    %v629 = vadd.f32 %v371, %v628
    %630 = vdwg.mxu0
    %631 = vmatprep.subr.mxu0 %v297
    %632 = vmatpush1.msra.mxu0 %v296
    %633 = vmatprep.subr.mxu0 %v295
    %634 = vmatpush1.msra.mxu0 %v294
    %635 = vmatprep.subr.mxu0 %v293
    %636 = vmatpush1.msra.mxu0 %v292
    %637 = vmatprep.subr.mxu0 %v291
    %638 = vmatpush1.msra.mxu0 %v290
    %639 = vmatprep.subr.mxu0 %v289
    %640 = vmatpush1.msra.mxu0 %v288
    %641 = vmatprep.subr.mxu0 %v287
    %642 = vmatpush1.msra.mxu0 %v286
    %643 = vmatprep.subr.mxu0 %v285
    %644 = vmatpush1.msra.mxu0 %v284
    %645 = vmatprep.subr.mxu0 %v283
    %646 = vmatpush1.msra.mxu0 %v282
    %647 = vmatprep.subr.mxu0 %v281
    %648 = vmatpush1.msra.mxu0 %v280
    %649 = vmatprep.subr.mxu0 %v279
    %650 = vmatpush1.msra.mxu0 %v278
    %651 = vmatprep.subr.mxu0 %v277
    %652 = vmatpush1.msra.mxu0 %v276
    %653 = vmatprep.subr.mxu0 %v275
    %654 = vmatpush1.msra.mxu0 %v274
    %655 = vmatprep.subr.mxu0 %v273
    %656 = vmatpush1.msra.mxu0 %v272
    %657 = vmatprep.subr.mxu0 %v271
    %658 = vmatpush1.msra.mxu0 %v270
    %659 = vmatprep.subr.mxu0 %v269
    %660 = vmatpush1.msra.mxu0 %v268
    %661 = vmatprep.subr.mxu0 %v267
    %662 = vmatpush1.msra.mxu0 %v266
    %663 = vmatprep.subr.mxu0 %v329
    %664 = vmatpush2.msra.mxu0 %v328
    %665 = vmatprep.subr.mxu0 %v327
    %666 = vmatpush2.msra.mxu0 %v326
    %667 = vmatprep.subr.mxu0 %v325
    %668 = vmatpush2.msra.mxu0 %v324
    %669 = vmatprep.subr.mxu0 %v323
    %670 = vmatpush2.msra.mxu0 %v322
    %671 = vmatprep.subr.mxu0 %v321
    %672 = vmatpush2.msra.mxu0 %v320
    %673 = vmatprep.subr.mxu0 %v319
    %674 = vmatpush2.msra.mxu0 %v318
    %675 = vmatprep.subr.mxu0 %v317
    %676 = vmatpush2.msra.mxu0 %v316
    %677 = vmatprep.subr.mxu0 %v315
    %678 = vmatpush2.msra.mxu0 %v314
    %679 = vmatprep.subr.mxu0 %v313
    %680 = vmatpush2.msra.mxu0 %v312
    %681 = vmatprep.subr.mxu0 %v311
    %682 = vmatpush2.msra.mxu0 %v310
    %683 = vmatprep.subr.mxu0 %v309
    %684 = vmatpush2.msra.mxu0 %v308
    %685 = vmatprep.subr.mxu0 %v307
    %686 = vmatpush2.msra.mxu0 %v306
    %687 = vmatprep.subr.mxu0 %v305
    %688 = vmatpush2.msra.mxu0 %v304
    %689 = vmatprep.subr.mxu0 %v303
    %690 = vmatpush2.msra.mxu0 %v302
    %691 = vmatprep.subr.mxu0 %v301
    %692 = vmatpush2.msra.mxu0 %v300
    %693 = vmatprep.subr.mxu0 %v299
    %694 = vmatpush2.msra.mxu0 %v298
    %695 = vmatprep.mubr.f32.mxu0 %v45
    %696 = vmatmul.mubr.f32.gmra.mxu0 %v44
    %v697 = vpop.f32.mrf.mxu0
    %v698 = vadd.f32 %v441, %v697
    %v699 = vpop.f32.mrf.mxu0
    %v700 = vadd.f32 %v443, %v699
    %701 = vmatprep.mubr.f32.mxu0 %v50
    %702 = vmatmul.mubr.f32.gmra.mxu0 %v49
    %v703 = vpop.f32.mrf.mxu0
    %v704 = vadd.f32 %v447, %v703
    %v705 = vpop.f32.mrf.mxu0
    %v706 = vadd.f32 %v449, %v705
    %707 = vmatprep.mubr.f32.mxu0 %v55
    %708 = vmatmul.mubr.f32.gmra.mxu0 %v54
    %v709 = vpop.f32.mrf.mxu0
    %v710 = vadd.f32 %v453, %v709
    %v711 = vpop.f32.mrf.mxu0
    %v712 = vadd.f32 %v455, %v711
    %713 = vmatprep.mubr.f32.mxu0 %v60
    %714 = vmatmul.mubr.f32.gmra.mxu0 %v59
    %v715 = vpop.f32.mrf.mxu0
    %v716 = vadd.f32 %v459, %v715
    %v717 = vpop.f32.mrf.mxu0
    %v718 = vadd.f32 %v461, %v717
    %719 = vmatprep.mubr.f32.mxu0 %v65
    %720 = vmatmul.mubr.f32.gmra.mxu0 %v64
    %v721 = vpop.f32.mrf.mxu0
    %v722 = vadd.f32 %v465, %v721
    %v723 = vpop.f32.mrf.mxu0
    %v724 = vadd.f32 %v467, %v723
    %725 = vmatprep.mubr.f32.mxu0 %v70
    %726 = vmatmul.mubr.f32.gmra.mxu0 %v69
    %v727 = vpop.f32.mrf.mxu0
    %v728 = vadd.f32 %v471, %v727
    %v729 = vpop.f32.mrf.mxu0
    %v730 = vadd.f32 %v473, %v729
    %731 = vmatprep.mubr.f32.mxu0 %v75
    %732 = vmatmul.mubr.f32.gmra.mxu0 %v74
    %v733 = vpop.f32.mrf.mxu0
    %v734 = vadd.f32 %v477, %v733
    %v735 = vpop.f32.mrf.mxu0
    %v736 = vadd.f32 %v479, %v735
    %737 = vmatprep.mubr.f32.mxu0 %v80
    %738 = vmatmul.mubr.f32.gmra.mxu0 %v79
    %v739 = vpop.f32.mrf.mxu0
    %v740 = vadd.f32 %v483, %v739
    %v741 = vpop.f32.mrf.mxu0
    %v742 = vadd.f32 %v485, %v741
    %743 = vmatprep.mubr.f32.mxu0 %v85
    %744 = vmatmul.mubr.f32.gmra.mxu0 %v84
    %v745 = vpop.f32.mrf.mxu0
    %v746 = vadd.f32 %v489, %v745
    %v747 = vpop.f32.mrf.mxu0
    %v748 = vadd.f32 %v491, %v747
    %749 = vmatprep.mubr.f32.mxu0 %v90
    %750 = vmatmul.mubr.f32.gmra.mxu0 %v89
    %v751 = vpop.f32.mrf.mxu0
    %v752 = vadd.f32 %v495, %v751
    %v753 = vpop.f32.mrf.mxu0
    %v754 = vadd.f32 %v497, %v753
    %755 = vmatprep.mubr.f32.mxu0 %v95
    %756 = vmatmul.mubr.f32.gmra.mxu0 %v94
    %v757 = vpop.f32.mrf.mxu0
    %v758 = vadd.f32 %v501, %v757
    %v759 = vpop.f32.mrf.mxu0
    %v760 = vadd.f32 %v503, %v759
    %761 = vmatprep.mubr.f32.mxu0 %v100
    %762 = vmatmul.mubr.f32.gmra.mxu0 %v99
    %v763 = vpop.f32.mrf.mxu0
    %v764 = vadd.f32 %v507, %v763
    %v765 = vpop.f32.mrf.mxu0
    %v766 = vadd.f32 %v509, %v765
    %767 = vmatprep.mubr.f32.mxu0 %v105
    %768 = vmatmul.mubr.f32.gmra.mxu0 %v104
    %v769 = vpop.f32.mrf.mxu0
    %v770 = vadd.f32 %v513, %v769
    %v771 = vpop.f32.mrf.mxu0
    %v772 = vadd.f32 %v515, %v771
    %773 = vmatprep.mubr.f32.mxu0 %v110
    %774 = vmatmul.mubr.f32.gmra.mxu0 %v109
    %v775 = vpop.f32.mrf.mxu0
    %v776 = vadd.f32 %v519, %v775
    %v777 = vpop.f32.mrf.mxu0
    %v778 = vadd.f32 %v521, %v777
    %779 = vmatprep.mubr.f32.mxu0 %v115
    %780 = vmatmul.mubr.f32.gmra.mxu0 %v114
    %v781 = vpop.f32.mrf.mxu0
    %v782 = vadd.f32 %v525, %v781
    %v783 = vpop.f32.mrf.mxu0
    %v784 = vadd.f32 %v527, %v783
    %785 = vmatprep.mubr.f32.mxu0 %v120
    %786 = vmatmul.mubr.f32.gmra.mxu0 %v119
    %v787 = vpop.f32.mrf.mxu0
    %v788 = vadd.f32 %v531, %v787
    %v789 = vpop.f32.mrf.mxu0
    %v790 = vadd.f32 %v533, %v789
    %791 = vmatprep.mubr.f32.mxu0 %v125
    %792 = vmatmul.mubr.f32.gmra.mxu0 %v124
    %v793 = vpop.f32.mrf.mxu0
    %v794 = vadd.f32 %v537, %v793
    %v795 = vpop.f32.mrf.mxu0
    %v796 = vadd.f32 %v539, %v795
    %797 = vmatprep.mubr.f32.mxu0 %v130
    %798 = vmatmul.mubr.f32.gmra.mxu0 %v129
    %v799 = vpop.f32.mrf.mxu0
    %v800 = vadd.f32 %v543, %v799
    %v801 = vpop.f32.mrf.mxu0
    %v802 = vadd.f32 %v545, %v801
    %803 = vmatprep.mubr.f32.mxu0 %v135
    %804 = vmatmul.mubr.f32.gmra.mxu0 %v134
    %v805 = vpop.f32.mrf.mxu0
    %v806 = vadd.f32 %v549, %v805
    %v807 = vpop.f32.mrf.mxu0
    %v808 = vadd.f32 %v551, %v807
    %809 = vmatprep.mubr.f32.mxu0 %v140
    %810 = vmatmul.mubr.f32.gmra.mxu0 %v139
    %v811 = vpop.f32.mrf.mxu0
    %v812 = vadd.f32 %v555, %v811
    %v813 = vpop.f32.mrf.mxu0
    %v814 = vadd.f32 %v557, %v813
    %815 = vmatprep.mubr.f32.mxu0 %v145
    %816 = vmatmul.mubr.f32.gmra.mxu0 %v144
    %v817 = vpop.f32.mrf.mxu0
    %v818 = vadd.f32 %v561, %v817
    %v819 = vpop.f32.mrf.mxu0
    %v820 = vadd.f32 %v563, %v819
    %821 = vmatprep.mubr.f32.mxu0 %v150
    %822 = vmatmul.mubr.f32.gmra.mxu0 %v149
    %v823 = vpop.f32.mrf.mxu0
    %v824 = vadd.f32 %v567, %v823
    %v825 = vpop.f32.mrf.mxu0
    %v826 = vadd.f32 %v569, %v825
    %827 = vmatprep.mubr.f32.mxu0 %v155
    %828 = vmatmul.mubr.f32.gmra.mxu0 %v154
    %v829 = vpop.f32.mrf.mxu0
    %v830 = vadd.f32 %v573, %v829
    %v831 = vpop.f32.mrf.mxu0
    %v832 = vadd.f32 %v575, %v831
    %833 = vmatprep.mubr.f32.mxu0 %v160
    %834 = vmatmul.mubr.f32.gmra.mxu0 %v159
    %v835 = vpop.f32.mrf.mxu0
    %v836 = vadd.f32 %v579, %v835
    %v837 = vpop.f32.mrf.mxu0
    %v838 = vadd.f32 %v581, %v837
    %839 = vmatprep.mubr.f32.mxu0 %v165
    %840 = vmatmul.mubr.f32.gmra.mxu0 %v164
    %v841 = vpop.f32.mrf.mxu0
    %v842 = vadd.f32 %v585, %v841
    %v843 = vpop.f32.mrf.mxu0
    %v844 = vadd.f32 %v587, %v843
    %845 = vmatprep.mubr.f32.mxu0 %v170
    %846 = vmatmul.mubr.f32.gmra.mxu0 %v169
    %v847 = vpop.f32.mrf.mxu0
    %v848 = vadd.f32 %v591, %v847
    %v849 = vpop.f32.mrf.mxu0
    %v850 = vadd.f32 %v593, %v849
    %851 = vmatprep.mubr.f32.mxu0 %v175
    %852 = vmatmul.mubr.f32.gmra.mxu0 %v174
    %v853 = vpop.f32.mrf.mxu0
    %v854 = vadd.f32 %v597, %v853
    %v855 = vpop.f32.mrf.mxu0
    %v856 = vadd.f32 %v599, %v855
    %857 = vmatprep.mubr.f32.mxu0 %v180
    %858 = vmatmul.mubr.f32.gmra.mxu0 %v179
    %v859 = vpop.f32.mrf.mxu0
    %v860 = vadd.f32 %v603, %v859
    %v861 = vpop.f32.mrf.mxu0
    %v862 = vadd.f32 %v605, %v861
    %863 = vmatprep.mubr.f32.mxu0 %v185
    %864 = vmatmul.mubr.f32.gmra.mxu0 %v184
    %v865 = vpop.f32.mrf.mxu0
    %v866 = vadd.f32 %v609, %v865
    %v867 = vpop.f32.mrf.mxu0
    %v868 = vadd.f32 %v611, %v867
    %869 = vmatprep.mubr.f32.mxu0 %v190
    %870 = vmatmul.mubr.f32.gmra.mxu0 %v189
    %v871 = vpop.f32.mrf.mxu0
    %v872 = vadd.f32 %v615, %v871
    %v873 = vpop.f32.mrf.mxu0
    %v874 = vadd.f32 %v617, %v873
    %875 = vmatprep.mubr.f32.mxu0 %v195
    %876 = vmatmul.mubr.f32.gmra.mxu0 %v194
    %v877 = vpop.f32.mrf.mxu0
    %v878 = vadd.f32 %v621, %v877
    %v879 = vpop.f32.mrf.mxu0
    %v880 = vadd.f32 %v623, %v879
    %881 = vmatprep.mubr.f32.mxu0 %v200
    %882 = vmatmul.mubr.f32.gmra.mxu0 %v199
    %v883 = vpop.f32.mrf.mxu0
    %v884 = vadd.f32 %v627, %v883
    %v885 = vpop.f32.mrf.mxu0
    %v886 = vadd.f32 %v629, %v885
    %887 = vdwg.mxu0
    %888 = vmatprep.subr.mxu0 %v361
    %889 = vmatpush1.msra.mxu0 %v360
    %890 = vmatprep.subr.mxu0 %v359
    %891 = vmatpush1.msra.mxu0 %v358
    %892 = vmatprep.subr.mxu0 %v357
    %893 = vmatpush1.msra.mxu0 %v356
    %894 = vmatprep.subr.mxu0 %v355
    %895 = vmatpush1.msra.mxu0 %v354
    %896 = vmatprep.subr.mxu0 %v353
    %897 = vmatpush1.msra.mxu0 %v352
    %898 = vmatprep.subr.mxu0 %v351
    %899 = vmatpush1.msra.mxu0 %v350
    %900 = vmatprep.subr.mxu0 %v349
    %901 = vmatpush1.msra.mxu0 %v348
    %902 = vmatprep.subr.mxu0 %v347
    %903 = vmatpush1.msra.mxu0 %v346
    %904 = vmatprep.subr.mxu0 %v345
    %905 = vmatpush1.msra.mxu0 %v344
    %906 = vmatprep.subr.mxu0 %v343
    %907 = vmatpush1.msra.mxu0 %v342
    %908 = vmatprep.subr.mxu0 %v341
    %909 = vmatpush1.msra.mxu0 %v340
    %910 = vmatprep.subr.mxu0 %v339
    %911 = vmatpush1.msra.mxu0 %v338
    %912 = vmatprep.subr.mxu0 %v337
    %913 = vmatpush1.msra.mxu0 %v336
    %914 = vmatprep.subr.mxu0 %v335
    %915 = vmatpush1.msra.mxu0 %v334
    %916 = vmatprep.subr.mxu0 %v333
    %917 = vmatpush1.msra.mxu0 %v332
    %918 = vmatprep.subr.mxu0 %v331
    %919 = vmatpush1.msra.mxu0 %v330
    %920 = vmatprep.subr.mxu0 0.0
    %921 = vmatpush2.msra.mxu0 0.0
    %922 = vmatprep.subr.mxu0 0.0
    %923 = vmatpush2.msra.mxu0 0.0
    %924 = vmatprep.subr.mxu0 0.0
    %925 = vmatpush2.msra.mxu0 0.0
    %926 = vmatprep.subr.mxu0 0.0
    %927 = vmatpush2.msra.mxu0 0.0
    %928 = vmatprep.subr.mxu0 0.0
    %929 = vmatpush2.msra.mxu0 0.0
    %930 = vmatprep.subr.mxu0 0.0
    %931 = vmatpush2.msra.mxu0 0.0
    %932 = vmatprep.subr.mxu0 0.0
    %933 = vmatpush2.msra.mxu0 0.0
    %934 = vmatprep.subr.mxu0 0.0
    %935 = vmatpush2.msra.mxu0 0.0
    %936 = vmatprep.subr.mxu0 0.0
    %937 = vmatpush2.msra.mxu0 0.0
    %938 = vmatprep.subr.mxu0 0.0
    %939 = vmatpush2.msra.mxu0 0.0
    %940 = vmatprep.subr.mxu0 0.0
    %941 = vmatpush2.msra.mxu0 0.0
    %942 = vmatprep.subr.mxu0 0.0
    %943 = vmatpush2.msra.mxu0 0.0
    %944 = vmatprep.subr.mxu0 0.0
    %945 = vmatpush2.msra.mxu0 0.0
    %946 = vmatprep.subr.mxu0 0.0
    %947 = vmatpush2.msra.mxu0 0.0
    %948 = vmatprep.subr.mxu0 0.0
    %949 = vmatpush2.msra.mxu0 0.0
    %950 = vmatprep.subr.mxu0 0.0
    %951 = vmatpush2.msra.mxu0 0.0
    %952 = vmatprep.mubr.f32.mxu0 0.0
    %953 = vmatmul.mubr.f32.gmra.mxu0 %v46
    %v954 = vpop.f32.mrf.mxu0
    %v955 = vadd.f32 %v698, %v954
    %v956 = vpop.f32.mrf.mxu0
    %v957 = vadd.f32 %v700, %v956
    %958 = vmatprep.mubr.f32.mxu0 0.0
    %959 = vmatmul.mubr.f32.gmra.mxu0 %v51
    %v960 = vpop.f32.mrf.mxu0
    %v961 = vadd.f32 %v704, %v960
    %v962 = vpop.f32.mrf.mxu0
    %v963 = vadd.f32 %v706, %v962
    %964 = vmatprep.mubr.f32.mxu0 0.0
    %965 = vmatmul.mubr.f32.gmra.mxu0 %v56
    %v966 = vpop.f32.mrf.mxu0
    %v967 = vadd.f32 %v710, %v966
    %v968 = vpop.f32.mrf.mxu0
    %v969 = vadd.f32 %v712, %v968
    %970 = vmatprep.mubr.f32.mxu0 0.0
    %971 = vmatmul.mubr.f32.gmra.mxu0 %v61
    %v972 = vpop.f32.mrf.mxu0
    %v973 = vadd.f32 %v716, %v972
    %v974 = vpop.f32.mrf.mxu0
    %v975 = vadd.f32 %v718, %v974
    %976 = vmatprep.mubr.f32.mxu0 0.0
    %977 = vmatmul.mubr.f32.gmra.mxu0 %v66
    %v978 = vpop.f32.mrf.mxu0
    %v979 = vadd.f32 %v722, %v978
    %v980 = vpop.f32.mrf.mxu0
    %v981 = vadd.f32 %v724, %v980
    %982 = vmatprep.mubr.f32.mxu0 0.0
    %983 = vmatmul.mubr.f32.gmra.mxu0 %v71
    %v984 = vpop.f32.mrf.mxu0
    %v985 = vadd.f32 %v728, %v984
    %v986 = vpop.f32.mrf.mxu0
    %v987 = vadd.f32 %v730, %v986
    %988 = vmatprep.mubr.f32.mxu0 0.0
    %989 = vmatmul.mubr.f32.gmra.mxu0 %v76
    %v990 = vpop.f32.mrf.mxu0
    %v991 = vadd.f32 %v734, %v990
    %v992 = vpop.f32.mrf.mxu0
    %v993 = vadd.f32 %v736, %v992
    %994 = vmatprep.mubr.f32.mxu0 0.0
    %995 = vmatmul.mubr.f32.gmra.mxu0 %v81
    %v996 = vpop.f32.mrf.mxu0
    %v997 = vadd.f32 %v740, %v996
    %v998 = vpop.f32.mrf.mxu0
    %v999 = vadd.f32 %v742, %v998
    %1000 = vmatprep.mubr.f32.mxu0 0.0
    %1001 = vmatmul.mubr.f32.gmra.mxu0 %v86
    %v1002 = vpop.f32.mrf.mxu0
    %v1003 = vadd.f32 %v746, %v1002
    %v1004 = vpop.f32.mrf.mxu0
    %v1005 = vadd.f32 %v748, %v1004
    %1006 = vmatprep.mubr.f32.mxu0 0.0
    %1007 = vmatmul.mubr.f32.gmra.mxu0 %v91
    %v1008 = vpop.f32.mrf.mxu0
    %v1009 = vadd.f32 %v752, %v1008
    %v1010 = vpop.f32.mrf.mxu0
    %v1011 = vadd.f32 %v754, %v1010
    %1012 = vmatprep.mubr.f32.mxu0 0.0
    %1013 = vmatmul.mubr.f32.gmra.mxu0 %v96
    %v1014 = vpop.f32.mrf.mxu0
    %v1015 = vadd.f32 %v758, %v1014
    %v1016 = vpop.f32.mrf.mxu0
    %v1017 = vadd.f32 %v760, %v1016
    %1018 = vmatprep.mubr.f32.mxu0 0.0
    %1019 = vmatmul.mubr.f32.gmra.mxu0 %v101
    %v1020 = vpop.f32.mrf.mxu0
    %v1021 = vadd.f32 %v764, %v1020
    %v1022 = vpop.f32.mrf.mxu0
    %v1023 = vadd.f32 %v766, %v1022
    %1024 = vmatprep.mubr.f32.mxu0 0.0
    %1025 = vmatmul.mubr.f32.gmra.mxu0 %v106
    %v1026 = vpop.f32.mrf.mxu0
    %v1027 = vadd.f32 %v770, %v1026
    %v1028 = vpop.f32.mrf.mxu0
    %v1029 = vadd.f32 %v772, %v1028
    %1030 = vmatprep.mubr.f32.mxu0 0.0
    %1031 = vmatmul.mubr.f32.gmra.mxu0 %v111
    %v1032 = vpop.f32.mrf.mxu0
    %v1033 = vadd.f32 %v776, %v1032
    %v1034 = vpop.f32.mrf.mxu0
    %v1035 = vadd.f32 %v778, %v1034
    %1036 = vmatprep.mubr.f32.mxu0 0.0
    %1037 = vmatmul.mubr.f32.gmra.mxu0 %v116
    %v1038 = vpop.f32.mrf.mxu0
    %v1039 = vadd.f32 %v782, %v1038
    %v1040 = vpop.f32.mrf.mxu0
    %v1041 = vadd.f32 %v784, %v1040
    %1042 = vmatprep.mubr.f32.mxu0 0.0
    %1043 = vmatmul.mubr.f32.gmra.mxu0 %v121
    %v1044 = vpop.f32.mrf.mxu0
    %v1045 = vadd.f32 %v788, %v1044
    %v1046 = vpop.f32.mrf.mxu0
    %v1047 = vadd.f32 %v790, %v1046
    %1048 = vmatprep.mubr.f32.mxu0 0.0
    %1049 = vmatmul.mubr.f32.gmra.mxu0 %v126
    %v1050 = vpop.f32.mrf.mxu0
    %v1051 = vadd.f32 %v794, %v1050
    %v1052 = vpop.f32.mrf.mxu0
    %v1053 = vadd.f32 %v796, %v1052
    %1054 = vmatprep.mubr.f32.mxu0 0.0
    %1055 = vmatmul.mubr.f32.gmra.mxu0 %v131
    %v1056 = vpop.f32.mrf.mxu0
    %v1057 = vadd.f32 %v800, %v1056
    %v1058 = vpop.f32.mrf.mxu0
    %v1059 = vadd.f32 %v802, %v1058
    %1060 = vmatprep.mubr.f32.mxu0 0.0
    %1061 = vmatmul.mubr.f32.gmra.mxu0 %v136
    %v1062 = vpop.f32.mrf.mxu0
    %v1063 = vadd.f32 %v806, %v1062
    %v1064 = vpop.f32.mrf.mxu0
    %v1065 = vadd.f32 %v808, %v1064
    %1066 = vmatprep.mubr.f32.mxu0 0.0
    %1067 = vmatmul.mubr.f32.gmra.mxu0 %v141
    %v1068 = vpop.f32.mrf.mxu0
    %v1069 = vadd.f32 %v812, %v1068
    %v1070 = vpop.f32.mrf.mxu0
    %v1071 = vadd.f32 %v814, %v1070
    %1072 = vmatprep.mubr.f32.mxu0 0.0
    %1073 = vmatmul.mubr.f32.gmra.mxu0 %v146
    %v1074 = vpop.f32.mrf.mxu0
    %v1075 = vadd.f32 %v818, %v1074
    %v1076 = vpop.f32.mrf.mxu0
    %v1077 = vadd.f32 %v820, %v1076
    %1078 = vmatprep.mubr.f32.mxu0 0.0
    %1079 = vmatmul.mubr.f32.gmra.mxu0 %v151
    %v1080 = vpop.f32.mrf.mxu0
    %v1081 = vadd.f32 %v824, %v1080
    %v1082 = vpop.f32.mrf.mxu0
    %v1083 = vadd.f32 %v826, %v1082
    %1084 = vmatprep.mubr.f32.mxu0 0.0
    %1085 = vmatmul.mubr.f32.gmra.mxu0 %v156
    %v1086 = vpop.f32.mrf.mxu0
    %v1087 = vadd.f32 %v830, %v1086
    %v1088 = vpop.f32.mrf.mxu0
    %v1089 = vadd.f32 %v832, %v1088
    %1090 = vmatprep.mubr.f32.mxu0 0.0
    %1091 = vmatmul.mubr.f32.gmra.mxu0 %v161
    %v1092 = vpop.f32.mrf.mxu0
    %v1093 = vadd.f32 %v836, %v1092
    %v1094 = vpop.f32.mrf.mxu0
    %v1095 = vadd.f32 %v838, %v1094
    %1096 = vmatprep.mubr.f32.mxu0 0.0
    %1097 = vmatmul.mubr.f32.gmra.mxu0 %v166
    %v1098 = vpop.f32.mrf.mxu0
    %v1099 = vadd.f32 %v842, %v1098
    %v1100 = vpop.f32.mrf.mxu0
    %v1101 = vadd.f32 %v844, %v1100
    %1102 = vmatprep.mubr.f32.mxu0 0.0
    %1103 = vmatmul.mubr.f32.gmra.mxu0 %v171
    %v1104 = vpop.f32.mrf.mxu0
    %v1105 = vadd.f32 %v848, %v1104
    %v1106 = vpop.f32.mrf.mxu0
    %v1107 = vadd.f32 %v850, %v1106
    %1108 = vmatprep.mubr.f32.mxu0 0.0
    %1109 = vmatmul.mubr.f32.gmra.mxu0 %v176
    %v1110 = vpop.f32.mrf.mxu0
    %v1111 = vadd.f32 %v854, %v1110
    %v1112 = vpop.f32.mrf.mxu0
    %v1113 = vadd.f32 %v856, %v1112
    %1114 = vmatprep.mubr.f32.mxu0 0.0
    %1115 = vmatmul.mubr.f32.gmra.mxu0 %v181
    %v1116 = vpop.f32.mrf.mxu0
    %v1117 = vadd.f32 %v860, %v1116
    %v1118 = vpop.f32.mrf.mxu0
    %v1119 = vadd.f32 %v862, %v1118
    %1120 = vmatprep.mubr.f32.mxu0 0.0
    %1121 = vmatmul.mubr.f32.gmra.mxu0 %v186
    %v1122 = vpop.f32.mrf.mxu0
    %v1123 = vadd.f32 %v866, %v1122
    %v1124 = vpop.f32.mrf.mxu0
    %v1125 = vadd.f32 %v868, %v1124
    %1126 = vmatprep.mubr.f32.mxu0 0.0
    %1127 = vmatmul.mubr.f32.gmra.mxu0 %v191
    %v1128 = vpop.f32.mrf.mxu0
    %v1129 = vadd.f32 %v872, %v1128
    %v1130 = vpop.f32.mrf.mxu0
    %v1131 = vadd.f32 %v874, %v1130
    %1132 = vmatprep.mubr.f32.mxu0 0.0
    %1133 = vmatmul.mubr.f32.gmra.mxu0 %v196
    %v1134 = vpop.f32.mrf.mxu0
    %v1135 = vadd.f32 %v878, %v1134
    %v1136 = vpop.f32.mrf.mxu0
    %v1137 = vadd.f32 %v880, %v1136
    %1138 = vmatprep.mubr.f32.mxu0 0.0
    %1139 = vmatmul.mubr.f32.gmra.mxu0 %v201
    %v1140 = vpop.f32.mrf.mxu0
    %v1141 = vadd.f32 %v884, %v1140
    %v1142 = vpop.f32.mrf.mxu0
    %v1143 = vadd.f32 %v886, %v1142
    %1144 = vdwg.mxu0
    %1145 = vst [vmem:[%s3] sm:$0xff] %v955
    %1146 = vst [vmem:[%s3 + $0x8] sm:$0xff] %v957
    %1147 = vst [vmem:[%s3 + $0x10] sm:$0xff] %v961
    %1148 = vst [vmem:[%s3 + $0x18] sm:$0xff] %v963
    %1149 = vst [vmem:[%s3 + $0x20] sm:$0xff] %v967
    %1150 = vst [vmem:[%s3 + $0x28] sm:$0xff] %v969
    %1151 = vst [vmem:[%s3 + $0x30] sm:$0xff] %v973
    %1152 = vst [vmem:[%s3 + $0x38] sm:$0xff] %v975
    %1153 = vst [vmem:[%s3 + $0x40] sm:$0xff] %v979
    %1154 = vst [vmem:[%s3 + $0x48] sm:$0xff] %v981
    %1155 = vst [vmem:[%s3 + $0x50] sm:$0xff] %v985
    %1156 = vst [vmem:[%s3 + $0x58] sm:$0xff] %v987
    %1157 = vst [vmem:[%s3 + $0x60] sm:$0xff] %v991
    %1158 = vst [vmem:[%s3 + $0x68] sm:$0xff] %v993
    %1159 = vst [vmem:[%s3 + $0x70] sm:$0xff] %v997
    %1160 = vst [vmem:[%s3 + $0x78] sm:$0xff] %v999
    %1161 = vst [vmem:[%s3 + $0x80] sm:$0xff] %v1003
    %1162 = vst [vmem:[%s3 + $0x88] sm:$0xff] %v1005
    %1163 = vst [vmem:[%s3 + $0x90] sm:$0xff] %v1009
    %1164 = vst [vmem:[%s3 + $0x98] sm:$0xff] %v1011
    %1165 = vst [vmem:[%s3 + $0xa0] sm:$0xff] %v1015
    %1166 = vst [vmem:[%s3 + $0xa8] sm:$0xff] %v1017
    %1167 = vst [vmem:[%s3 + $0xb0] sm:$0xff] %v1021
    %1168 = vst [vmem:[%s3 + $0xb8] sm:$0xff] %v1023
    %1169 = vst [vmem:[%s3 + $0xc0] sm:$0xff] %v1027
    %1170 = vst [vmem:[%s3 + $0xc8] sm:$0xff] %v1029
    %1171 = vst [vmem:[%s3 + $0xd0] sm:$0xff] %v1033
    %1172 = vst [vmem:[%s3 + $0xd8] sm:$0xff] %v1035
    %1173 = vst [vmem:[%s3 + $0xe0] sm:$0xff] %v1039
    %1174 = vst [vmem:[%s3 + $0xe8] sm:$0xff] %v1041
    %1175 = vst [vmem:[%s3 + $0xf0] sm:$0xff] %v1045
    %1176 = vst [vmem:[%s3 + $0xf8] sm:$0xff] %v1047
    %1177 = vst [vmem:[%s3 + $0x100] sm:$0xff] %v1051
    %1178 = vst [vmem:[%s3 + $0x108] sm:$0xff] %v1053
    %1179 = vst [vmem:[%s3 + $0x110] sm:$0xff] %v1057
    %1180 = vst [vmem:[%s3 + $0x118] sm:$0xff] %v1059
    %1181 = vst [vmem:[%s3 + $0x120] sm:$0xff] %v1063
    %1182 = vst [vmem:[%s3 + $0x128] sm:$0xff] %v1065
    %1183 = vst [vmem:[%s3 + $0x130] sm:$0xff] %v1069
    %1184 = vst [vmem:[%s3 + $0x138] sm:$0xff] %v1071
    %1185 = vst [vmem:[%s3 + $0x140] sm:$0xff] %v1075
    %1186 = vst [vmem:[%s3 + $0x148] sm:$0xff] %v1077
    %1187 = vst [vmem:[%s3 + $0x150] sm:$0xff] %v1081
    %1188 = vst [vmem:[%s3 + $0x158] sm:$0xff] %v1083
    %1189 = vst [vmem:[%s3 + $0x160] sm:$0xff] %v1087
    %1190 = vst [vmem:[%s3 + $0x168] sm:$0xff] %v1089
    %1191 = vst [vmem:[%s3 + $0x170] sm:$0xff] %v1093
    %1192 = vst [vmem:[%s3 + $0x178] sm:$0xff] %v1095
    %1193 = vst [vmem:[%s3 + $0x180] sm:$0xff] %v1099
    %1194 = vst [vmem:[%s3 + $0x188] sm:$0xff] %v1101
    %1195 = vst [vmem:[%s3 + $0x190] sm:$0xff] %v1105
    %1196 = vst [vmem:[%s3 + $0x198] sm:$0xff] %v1107
    %1197 = vst [vmem:[%s3 + $0x1a0] sm:$0xff] %v1111
    %1198 = vst [vmem:[%s3 + $0x1a8] sm:$0xff] %v1113
    %1199 = vst [vmem:[%s3 + $0x1b0] sm:$0xff] %v1117
    %1200 = vst [vmem:[%s3 + $0x1b8] sm:$0xff] %v1119
    %1201 = vst [vmem:[%s3 + $0x1c0] sm:$0xff] %v1123
    %1202 = vst [vmem:[%s3 + $0x1c8] sm:$0xff] %v1125
    %1203 = vst [vmem:[%s3 + $0x1d0] sm:$0xff] %v1129
    %1204 = vst [vmem:[%s3 + $0x1d8] sm:$0xff] %v1131
    %1205 = vst [vmem:[%s3 + $0x1e0] sm:$0xff] %v1135
    %1206 = vst [vmem:[%s3 + $0x1e8] sm:$0xff] %v1137
    %1207 = vst [vmem:[%s3 + $0x1f0] sm:$0xff] %v1141
    %1208 = vst [vmem:[%s3 + $0x1f8] sm:$0xff] %v1143
    // Predicated region
    $region22: #{one_layer_linear_prepared.1} parent=1 // pred_check
      _
    $region23: #{one_layer_linear_prepared.1} parent=1 // pred_check_branch
      %1210 = sbr.rel (0) target = $region25
    $region24: #{one_layer_linear_prepared.1} parent=1 // pred_region
      _
    $region25: #{one_layer_linear_prepared.1} parent=1 // pred_fallthru
      _
    // Predicated region
    $region26: #{one_layer_linear_prepared.1} parent=1 // pred_check
      _
    $region27: #{one_layer_linear_prepared.1} parent=1 // pred_check_branch
      %1212 = sbr.rel (0) target = $region29
    $region28: #{one_layer_linear_prepared.1} parent=1 // pred_region
      _
    $region29: #{one_layer_linear_prepared.1} parent=1 // pred_fallthru
      _
    %1213 = vsyncpa [#allocation3], 1
    %1214 = vsyncpa [#allocation5], 1

</llo_original>
